<compile_context>
chip_gen: v7x
topology: tpu7x:2x2x1
jax: 0.10.0
libtpu: 0.0.40
codegen_flags: <defaults>
</compile_context>

<pallas_src>
import math
import functools

import jax
import jax.numpy as jnp
from jax.experimental import pallas as pl
from jax.experimental.pallas import tpu as pltpu


_EPS = 1e-12  # F.normalize default eps


def _round_up(v, m):
    return ((v + m - 1) // m) * m


def _vmem_capacity_bytes():
    try:
        return int(pltpu.get_tpu_info().vmem_capacity_bytes)
    except Exception:
        return 64 * 1024 * 1024  # conservative: v7x has 64 MiB per TensorCore


def _select_tiles(C, D, dtype, P, *, block_b, block_c, vmem_limit):
    """Pick (tb_max, tc, Dp, sub) so the double-buffered working set fits VMEM."""
    itemsize = jnp.dtype(dtype).itemsize
    sub = max(8, 32 // itemsize)              # sublane packing: f32 8, bf16 16, int8 32
    Dp = _round_up(D, 256) if D > 128 else _round_up(D, 128)
    tb = max(sub, _round_up(block_b, sub))
    tc = min(max(128, _round_up(block_c, 128)), _round_up(C, 128))

    budget = int(vmem_limit * 0.85)

    def ws(tb_, tc_):
        return (2 * tb_ * Dp * itemsize            # x tile (double-buffered)
                + 2 * P * tc_ * Dp * itemsize      # weight slab (double-buffered)
                + 2 * (P * tc_ + tb_) * 4          # winv / xinv
                + 2 * tb_ * tc_ * itemsize         # output tile
                + (P + 6) * tb_ * tc_ * 4)         # f32 temporaries (s, m, num, den, ...)

    while ws(tb, tc) > budget and tc > 128:
        tc = max(128, (tc // 2) // 128 * 128)
    while ws(tb, tc) > budget and tb > sub:
        tb = max(sub, (tb // 2) // sub * sub)
    return tb, tc, Dp, sub


def _cosine_linear_kernel(x_ref, w_ref, winv_ref, xinv_ref, sigma_ref, out_ref,
                          *, nb_proxy):
    """One (class-tile, batch-tile) grid step.

    x_ref:     [tb, Dp]     native dtype, un-normalized input tile
    w_ref:     [P, tc, Dp]  native dtype, un-normalized proxy-major weight slab
    winv_ref:  [P, tc]      f32, 1/max(||w_row||,eps)  (sigma folded in if P==1)
    xinv_ref:  [tb, 1]      f32, 1/max(||x_row||,eps)  (precomputed in wrapper)
    sigma_ref: [1]          f32 scalar (SMEM), used only when P > 1
    out_ref:   [tb, tc]
    """
    P = nb_proxy
    x = x_ref[...]                                        # [tb, Dp]
    w = w_ref[...]                                        # [P, tc, Dp]
    tc = w.shape[1]

    xinv = xinv_ref[...]                                  # [tb, 1] f32
    winv = winv_ref[...]                                  # [P, tc] f32

    # Single MXU contraction over D for all proxies (Q·Kᵀ-style, no transpose):
    #   [tb, Dp] . [P*tc, Dp]^T -> [tb, P*tc]  (f32 accumulation)
    w2 = w.reshape(P * tc, w.shape[2])
    s = jax.lax.dot_general(
        x, w2,
        dimension_numbers=(((1,), (1,)), ((), ())),
        preferred_element_type=jnp.float32,
    )
    # Fold the x-normalization once across all proxies (hoisted out of the loop).
    s = s * xinv                                          # [tb, P*tc]

    if P == 1:
        # sigma already folded into winv by the wrapper.
        out_ref[...] = (s * winv[0:1, :]).astype(out_ref.dtype)
        return

    sigma = sigma_ref[0]

    # Streaming two-pass proxy softmax-reduction: keep s resident, recompute
    # cos_p = s_slice * winv_p on the fly so only ~3 extra tiles stay live.
    m = s[:, 0:tc] * winv[0:1, :]
    for p in range(1, P):
        m = jnp.maximum(m, s[:, p * tc:(p + 1) * tc] * winv[p:p + 1, :])

    num = jnp.zeros_like(m)
    den = jnp.zeros_like(m)
    for p in range(P):
        c = s[:, p * tc:(p + 1) * tc] * winv[p:p + 1, :]
        e = jnp.exp(c - m)
        den = den + e
        num = num + e * c

    # Exact reciprocal (approx=True would perturb the softmax beyond 1e-5 parity).
    out_ref[...] = ((sigma * num) * pl.reciprocal(den, approx=False)).astype(out_ref.dtype)


def prepare_cosine_linear(weight, sigma, *, nb_proxy=1, to_reduce=False,
                          block_b=256, block_c=512):
    """One-time (per weight update) prep: proxy-major rearrange + pad + norms.

    Cache the returned dict across forwards; rebuilding it per call is pure
    HBM traffic.
    """
    O, D = weight.shape
    reduce = bool(to_reduce) and nb_proxy > 1
    if reduce:
        assert O % nb_proxy == 0, "Shape error"
        C, P = O // nb_proxy, nb_proxy
        # Row r = class*nb_proxy + proxy  ->  proxy-major slab [P, C, D].
        w3 = weight.reshape(C, P, D).transpose(1, 0, 2)
    else:
        C, P = O, 1
        w3 = weight.reshape(1, O, D)

    vmem_limit = min(int(_vmem_capacity_bytes() * 0.8), 100 * 1024 * 1024)
    tb_max, tc, Dp, sub = _select_tiles(C, D, weight.dtype, P,
                                        block_b=block_b, block_c=block_c,
                                        vmem_limit=vmem_limit)
    Cp = _round_up(C, tc)

    # Per-row inverse weight norms, computed once (tiny [P, C] vector).
    w_sq = jnp.sum(w3.astype(jnp.float32) ** 2, axis=-1)                 # [P, C]
    winv = jax.lax.rsqrt(jnp.maximum(w_sq, jnp.float32(_EPS * _EPS)))    # 1/max(||w||,eps)

    sigma_val = jnp.asarray(1.0 if sigma is None else sigma, dtype=jnp.float32)
    if P == 1:
        winv = winv * sigma_val   # fold sigma: removes a full-tile multiply in-kernel

    w_p = jnp.pad(w3, ((0, 0), (0, Cp - C), (0, Dp - D)))
    winv_p = jnp.pad(winv, ((0, 0), (0, Cp - C)))
    sigma_arr = jnp.reshape(sigma_val, (1,))

    return dict(w=w_p, winv=winv_p, sigma=sigma_arr, nb_proxy=P,
                C=C, D=D, Cp=Cp, Dp=Dp, tc=tc, tb_max=tb_max, sub=sub,
                vmem_limit=vmem_limit)


def cosine_linear_forward(x, params):
    """Forward pass using cached weight prep. Returns {'logits': [B, C]}."""
    B, D = x.shape
    assert D == params["D"], "in_features mismatch"
    P, C = params["nb_proxy"], params["C"]
    Cp, Dp, tc = params["Cp"], params["Dp"], params["tc"]
    tb_max, sub = params["tb_max"], params["sub"]
    w_p, winv_p, sigma_arr = params["w"], params["winv"], params["sigma"]

    tb = min(tb_max, _round_up(B, sub))
    Bp = _round_up(B, tb)

    x_p = jnp.pad(x, ((0, Bp - B), (0, Dp - D)))
    # Per-row inverse x norms, once per forward (not once per class tile).
    x_sq = jnp.sum(x_p.astype(jnp.float32) ** 2, axis=-1, keepdims=True)     # [Bp, 1]
    xinv = jax.lax.rsqrt(jnp.maximum(x_sq, jnp.float32(_EPS * _EPS)))

    itemsize = jnp.dtype(x.dtype).itemsize
    n_b, n_c = Bp // tb, Cp // tc
    w_bytes = int(w_p.size) * w_p.dtype.itemsize
    x_bytes = int(x_p.size) * itemsize

    # Grid order: stream the larger operand from HBM exactly once. Class-outer
    # additionally lets v7x megacore split the weight slab between TensorCores.
    class_outer = (w_bytes + x_bytes * n_c) <= (x_bytes + w_bytes * n_b)
    if class_outer:
        grid = (n_c, n_b)
        x_map = lambda c, b: (b, 0)
        w_map = lambda c, b: (0, c, 0)          # weight block fixed across inner (batch) axis
        winv_map = lambda c, b: (0, c)
        xinv_map = lambda c, b: (b, 0)
        out_map = lambda c, b: (b, c)
    else:
        grid = (n_b, n_c)
        x_map = lambda b, c: (b, 0)             # x block fixed across inner (class) axis
        w_map = lambda b, c: (0, c, 0)
        winv_map = lambda b, c: (0, c)
        xinv_map = lambda b, c: (b, 0)
        out_map = lambda b, c: (b, c)

    cost = pl.CostEstimate(
        flops=int(2 * Bp * P * Cp * Dp),
        transcendentals=int(Bp * P * Cp) if P > 1 else 0,
        bytes_accessed=int((w_bytes + x_bytes * n_c) if class_outer
                           else (x_bytes + w_bytes * n_b)) + int(Bp * Cp * itemsize),
    )

    kernel = functools.partial(_cosine_linear_kernel, nb_proxy=P)
    out = pl.pallas_call(
        kernel,
        out_shape=jax.ShapeDtypeStruct((Bp, Cp), x.dtype),
        grid=grid,
        in_specs=[
            pl.BlockSpec((tb, Dp), x_map),                         # x batch tile
            pl.BlockSpec((P, tc, Dp), w_map),                      # weight slab tile
            pl.BlockSpec((P, tc), winv_map),                       # inv weight norms
            pl.BlockSpec((tb, 1), xinv_map),                       # inv x norms
            pl.BlockSpec(memory_space=pltpu.MemorySpace.SMEM),     # sigma scalar
        ],
        out_specs=pl.BlockSpec((tb, tc), out_map),
        compiler_params=pltpu.CompilerParams(
            dimension_semantics=("parallel", "parallel"),
            vmem_limit_bytes=params["vmem_limit"],
        ),
        cost_estimate=cost,
    )(x_p, w_p, winv_p, xinv, sigma_arr)

    return {"logits": out[:B, :C]}


# ---------------- pure-JAX reference (mirrors the PyTorch forward) ----------------
def _reference(x, weight, sigma, nb_proxy, to_reduce):
    eps = 1e-12
    xn = x / jnp.maximum(jnp.linalg.norm(x, axis=1, keepdims=True), eps)
    wn = weight / jnp.maximum(jnp.linalg.norm(weight, axis=1, keepdims=True), eps)
    out = xn @ wn.T
    if to_reduce and nb_proxy > 1:
        B, O = out.shape
        C = O // nb_proxy
        simi = out.reshape(B, C, nb_proxy)
        att = jax.nn.softmax(simi, axis=-1)
        out = jnp.sum(att * simi, axis=-1)
    if sigma is not None:
        out = sigma * out
    return out


if __name__ == "__main__":
    key = jax.random.PRNGKey(0)
    B, in_features, out_features, nb_proxy = 16, 64, 10, 2

    kx, kw = jax.random.split(key)
    x = jax.random.normal(kx, (B, in_features), dtype=jnp.float32)

    # Deterministic init matching reset_parameters(): uniform(-stdv, stdv), sigma = 1
    stdv = 1.0 / math.sqrt(in_features)
    weight = jax.random.uniform(
        kw, (out_features * nb_proxy, in_features),
        minval=-stdv, maxval=stdv, dtype=jnp.float32)
    sigma = jnp.float32(1.0)

    # Case 1: to_reduce=True (fused proxy softmax-reduction), f32.
    # Weight prep is done ONCE and reused across forwards.
    prep_red = prepare_cosine_linear(weight, sigma, nb_proxy=nb_proxy, to_reduce=True)
    out = jax.block_until_ready(cosine_linear_forward(x, prep_red)["logits"])
    ref = _reference(x, weight, sigma, nb_proxy, True)
    assert out.shape == (B, out_features)
    assert jnp.allclose(out, ref, atol=1e-5, rtol=1e-5), "reduced path mismatch"

    # Re-run with the cached prep on a fresh batch (multiple forwards / weight update).
    x2 = jax.random.normal(jax.random.PRNGKey(1), (B, in_features), dtype=jnp.float32)
    out_b = jax.block_until_ready(cosine_linear_forward(x2, prep_red)["logits"])
    ref_b = _reference(x2, weight, sigma, nb_proxy, True)
    assert jnp.allclose(out_b, ref_b, atol=1e-5, rtol=1e-5), "cached-prep mismatch"

    # Case 2: to_reduce=False (plain cosine linear over all proxy rows), f32
    prep_plain = prepare_cosine_linear(weight, sigma, nb_proxy=nb_proxy, to_reduce=False)
    out2 = jax.block_until_ready(cosine_linear_forward(x, prep_plain)["logits"])
    ref2 = _reference(x, weight, sigma, nb_proxy, False)
    assert out2.shape == (B, out_features * nb_proxy)
    assert jnp.allclose(out2, ref2, atol=1e-5, rtol=1e-5), "plain path mismatch"

    # Case 3: bf16 operands (MXU-native dtype), norms/softmax still f32
    xb = x.astype(jnp.bfloat16)
    wb = weight.astype(jnp.bfloat16)
    prep_bf16 = prepare_cosine_linear(wb, sigma, nb_proxy=nb_proxy, to_reduce=True)
    out3 = jax.block_until_ready(cosine_linear_forward(xb, prep_bf16)["logits"])
    ref3 = _reference(xb.astype(jnp.float32), wb.astype(jnp.float32),
                      sigma, nb_proxy, True)
    assert out3.shape == (B, out_features)
    assert jnp.allclose(out3.astype(jnp.float32), ref3, atol=1e-2, rtol=1e-2), \
        "bf16 path mismatch"

    print("KERNEL_OK")
</pallas_src>

<mosaic_0001>
module attributes {stable_mosaic.version = 11 : i64} {
  func.func @_cosine_linear_kernel(%arg0: i32, %arg1: i32, %arg2: memref<16x128xf32, #tpu.memory_space<vmem>>, %arg3: memref<2x128x128xf32, #tpu.memory_space<vmem>>, %arg4: memref<2x128xf32, #tpu.memory_space<vmem>>, %arg5: memref<16x1xf32, #tpu.memory_space<vmem>>, %arg6: memref<1xf32, #tpu.memory_space<smem>>, %arg7: memref<16x128xf32, #tpu.memory_space<vmem>>) attributes {dimension_semantics = [#tpu.dimension_semantics<parallel>, #tpu.dimension_semantics<parallel>], iteration_bounds = array<i64: 1, 1>, scalar_prefetch = 0 : i64, scratch_operands = 0 : i64, tpu.core_type = #tpu.core_type<tc>, window_params = [{transform_indices = @transform_0, window_bounds = array<i64: 16, 128>}, {transform_indices = @transform_1, window_bounds = array<i64: 2, 128, 128>}, {transform_indices = @transform_2, window_bounds = array<i64: 2, 128>}, {transform_indices = @transform_3, window_bounds = array<i64: 16, 1>}, {transform_indices = @transform_4, window_bounds = array<i64: 1>}, {transform_indices = @transform_5, window_bounds = array<i64: 16, 128>}]} {
    %c0 = arith.constant 0 : index
    %c0_0 = arith.constant 0 : index
    %0 = vector.load %arg2[%c0, %c0_0] : memref<16x128xf32, #tpu.memory_space<vmem>>, vector<16x128xf32>
    %c0_1 = arith.constant 0 : index
    %c0_2 = arith.constant 0 : index
    %c0_3 = arith.constant 0 : index
    %1 = vector.load %arg3[%c0_1, %c0_2, %c0_3] : memref<2x128x128xf32, #tpu.memory_space<vmem>>, vector<2x128x128xf32>
    %c0_4 = arith.constant 0 : index
    %c0_5 = arith.constant 0 : index
    %2 = vector.load %arg5[%c0_4, %c0_5] : memref<16x1xf32, #tpu.memory_space<vmem>>, vector<16x1xf32>
    %c0_6 = arith.constant 0 : index
    %c0_7 = arith.constant 0 : index
    %3 = vector.load %arg4[%c0_6, %c0_7] : memref<2x128xf32, #tpu.memory_space<vmem>>, vector<2x128xf32>
    %4 = vector.shape_cast %1 : vector<2x128x128xf32> to vector<256x128xf32>
    %cst = arith.constant dense<0.000000e+00> : vector<16x256xf32>
    %5 = tpu.matmul %0, %4, %cst {dimension_numbers = #tpu.dot_dimension_numbers<[1], [1], [0], [0], [0, 0, 1, 0], [], []>} : vector<16x128xf32>, vector<256x128xf32>, vector<16x256xf32> -> vector<16x256xf32>
    %6 = vector.broadcast %2 : vector<16x1xf32> to vector<16x256xf32>
    %7 = arith.mulf %5, %6 : vector<16x256xf32>
    %c0_8 = arith.constant 0 : index
    %8 = memref.load %arg6[%c0_8] : memref<1xf32, #tpu.memory_space<smem>>
    %9 = vector.extract_strided_slice %7 {offsets = [0, 0], sizes = [16, 128], strides = [1, 1]} : vector<16x256xf32> to vector<16x128xf32>
    %10 = vector.extract_strided_slice %3 {offsets = [0, 0], sizes = [1, 128], strides = [1, 1]} : vector<2x128xf32> to vector<1x128xf32>
    %11 = vector.broadcast %10 : vector<1x128xf32> to vector<16x128xf32>
    %12 = arith.mulf %9, %11 : vector<16x128xf32>
    %13 = vector.extract_strided_slice %7 {offsets = [0, 128], sizes = [16, 128], strides = [1, 1]} : vector<16x256xf32> to vector<16x128xf32>
    %14 = vector.extract_strided_slice %3 {offsets = [1, 0], sizes = [1, 128], strides = [1, 1]} : vector<2x128xf32> to vector<1x128xf32>
    %15 = vector.broadcast %14 : vector<1x128xf32> to vector<16x128xf32>
    %16 = arith.mulf %13, %15 : vector<16x128xf32>
    %17 = arith.maximumf %12, %16 : vector<16x128xf32>
    %cst_9 = arith.constant 0.000000e+00 : f32
    %18 = vector.broadcast %cst_9 : f32 to vector<16x128xf32>
    %cst_10 = arith.constant 0.000000e+00 : f32
    %19 = vector.broadcast %cst_10 : f32 to vector<16x128xf32>
    %20 = vector.extract_strided_slice %7 {offsets = [0, 0], sizes = [16, 128], strides = [1, 1]} : vector<16x256xf32> to vector<16x128xf32>
    %21 = vector.extract_strided_slice %3 {offsets = [0, 0], sizes = [1, 128], strides = [1, 1]} : vector<2x128xf32> to vector<1x128xf32>
    %22 = vector.broadcast %21 : vector<1x128xf32> to vector<16x128xf32>
    %23 = arith.mulf %20, %22 : vector<16x128xf32>
    %24 = arith.subf %23, %17 : vector<16x128xf32>
    %25 = math.exp %24 : vector<16x128xf32>
    %26 = arith.addf %19, %25 : vector<16x128xf32>
    %27 = arith.mulf %25, %23 : vector<16x128xf32>
    %28 = arith.addf %18, %27 : vector<16x128xf32>
    %29 = vector.extract_strided_slice %7 {offsets = [0, 128], sizes = [16, 128], strides = [1, 1]} : vector<16x256xf32> to vector<16x128xf32>
    %30 = vector.extract_strided_slice %3 {offsets = [1, 0], sizes = [1, 128], strides = [1, 1]} : vector<2x128xf32> to vector<1x128xf32>
    %31 = vector.broadcast %30 : vector<1x128xf32> to vector<16x128xf32>
    %32 = arith.mulf %29, %31 : vector<16x128xf32>
    %33 = arith.subf %32, %17 : vector<16x128xf32>
    %34 = math.exp %33 : vector<16x128xf32>
    %35 = arith.addf %26, %34 : vector<16x128xf32>
    %36 = arith.mulf %34, %32 : vector<16x128xf32>
    %37 = arith.addf %28, %36 : vector<16x128xf32>
    %38 = vector.broadcast %8 : f32 to vector<16x128xf32>
    %39 = arith.mulf %38, %37 : vector<16x128xf32>
    %40 = tpu.reciprocal %35 : vector<16x128xf32> -> vector<16x128xf32>
    %41 = arith.mulf %39, %40 : vector<16x128xf32>
    %c0_11 = arith.constant 0 : index
    %c0_12 = arith.constant 0 : index
    %42 = vector.load %arg7[%c0_11, %c0_12] : memref<16x128xf32, #tpu.memory_space<vmem>>, vector<16x128xf32>
    tpu.vector_store %arg7[%c0_11, %c0_12], %41 {strides = array<i32>} : memref<16x128xf32, #tpu.memory_space<vmem>>, vector<16x128xf32>,
    return
  }
  func.func @transform_0(%arg0: i32, %arg1: i32) -> (i32, i32) {
    %c0_i32 = arith.constant 0 : i32
    %c0_i32_0 = arith.constant 0 : i32
    return %arg1, %c0_i32 : i32, i32
  }
  func.func @transform_1(%arg0: i32, %arg1: i32) -> (i32, i32, i32) {
    %c0_i32 = arith.constant 0 : i32
    %c0_i32_0 = arith.constant 0 : i32
    %c0_i32_1 = arith.constant 0 : i32
    return %c0_i32, %arg0, %c0_i32_0 : i32, i32, i32
  }
  func.func @transform_2(%arg0: i32, %arg1: i32) -> (i32, i32) {
    %c0_i32 = arith.constant 0 : i32
    %c0_i32_0 = arith.constant 0 : i32
    return %c0_i32, %arg0 : i32, i32
  }
  func.func @transform_3(%arg0: i32, %arg1: i32) -> (i32, i32) {
    %c0_i32 = arith.constant 0 : i32
    %c0_i32_0 = arith.constant 0 : i32
    return %arg1, %c0_i32 : i32, i32
  }
  func.func @transform_4(%arg0: i32, %arg1: i32) -> i32 {
    %c0_i32 = arith.constant 0 : i32
    %c0_i32_0 = arith.constant 0 : i32
    return %c0_i32 : i32
  }
  func.func @transform_5(%arg0: i32, %arg1: i32) -> (i32, i32) {
    %c0_i32 = arith.constant 0 : i32
    return %arg1, %arg0 : i32, i32
  }
}

</mosaic_0001>

<llo_original>
// kernel: tpu_custom_call.1
$region0: #{tpu_custom_call.1}
  #allocation0 [shape = 'u32[]', space=smem, size = 0x4, offset = 0x4, fixed_abs, tag = 'smem constant byte address 0x4 - core index']
  #allocation1 [shape = 'u32[144,128]{1,0:T(1,128)}', space=vmem, size = 0x12000, scoped, tag = 'internal scratch']
  #allocation2 [shape = 'f32[1]{0:T(128)S(6)}', space=smem, size = 0x200, scoped, tag = 'scoped memory for tpu_custom_call.1']
  %s0 = inlined_call_operand.vmem [shape: f32[16,128], index: 0, kind: input, shape index: {}]
  %s1 = inlined_call_operand.hbm [shape: f32[2,128,128], index: 1, kind: input, shape index: {}]
  %s2 = inlined_call_operand.vmem [shape: f32[2,128], index: 2, kind: input, shape index: {}]
  %s3 = inlined_call_operand.vmem [shape: f32[16,1], index: 3, kind: input, shape index: {}]
  %s4 = inlined_call_operand.<no memory space> [shape: f32[1], index: 4, kind: input, shape index: {}]
  %s5 = inlined_call_operand.hbm [shape: f32[16,128], index: 5, kind: output, shape index: {}]
  %s6 = sld [smem:[#allocation0]]
  $region34: #{tpu_custom_call.1} parent=0
    _
  %s8 = ssub.s32 1, %s6
  %s9 = scalar_select 0, %s8, %s6
  %10 = sst [smem:[#allocation2]] %s4
  $region1: #{tpu_custom_call.1} parent=0
    #allocation3 [shape = 'u8[131072]{0}', space=vmem, size = 0x20000, scoped, tag = 'input window, operand 1, single buffered']
    #allocation4 [shape = 's32[1]{0}', space=sflag, size = 0x4, scoped, tag = 'scoped memory for tpu_custom_call.1']
    #allocation5 [shape = 's32[1]{0}', space=sflag, size = 0x4, scoped, tag = 'scoped memory for tpu_custom_call.1']
    #allocation6 [shape = 'u8[8192]{0}', space=vmem, size = 0x2000, scoped, tag = 'output window, operand 0, single buffered']
    %11 = vsyncpa [#allocation4], 0
    %12 = vsyncpa [#allocation5], 0
    // Predicated region
    $region2: #{tpu_custom_call.1} parent=1 // pred_check
      _
    $region3: #{tpu_custom_call.1} parent=1 // pred_check_branch
      %14 = sbr.rel (0) target = $region5
    $region4: #{tpu_custom_call.1} parent=1 // pred_region
      _
    $region5: #{tpu_custom_call.1} parent=1 // pred_fallthru
      _
    // Predicated region
    $region6: #{tpu_custom_call.1} parent=1 // pred_check
      _
    $region7: #{tpu_custom_call.1} parent=1 // pred_check_branch
      %16 = sbr.rel (0) target = $region9
    $region8: #{tpu_custom_call.1} parent=1 // pred_region
      %s18 = ssub.s32 4096, 4096
      %19 = vsyncadd [#allocation4], %s18
      %s20 = sshll.u32 [#allocation3], 4
      %s21 = int_to_ptr.vmem [resolvable:$true] %s20
      %26 = dma.hbm_to_vmem [thread:$0]  %s1, 4096, %s21, [#allocation4], 128, 128, 8
    $region9: #{tpu_custom_call.1} parent=1 // pred_fallthru
      _
    // Predicated region
    $region10: #{tpu_custom_call.1} parent=1 // pred_check
      _
    $region11: #{tpu_custom_call.1} parent=1 // pred_check_branch
      %28 = sbr.rel (0) target = $region13
    $region12: #{tpu_custom_call.1} parent=1 // pred_region
      _
    $region13: #{tpu_custom_call.1} parent=1 // pred_fallthru
      _
    // Predicated region
    $region14: #{tpu_custom_call.1} parent=1 // pred_check
      _
    $region15: #{tpu_custom_call.1} parent=1 // pred_check_branch
      %30 = sbr.rel (0) target = $region17
    $region16: #{tpu_custom_call.1} parent=1 // pred_region
      _
    $region17: #{tpu_custom_call.1} parent=1 // pred_fallthru
      _
    // Predicated region
    $region18: #{tpu_custom_call.1} parent=1 // pred_check
      _
    $region19: #{tpu_custom_call.1} parent=1 // pred_check_branch
      %32 = sbr.rel (0) target = $region21
    $region20: #{tpu_custom_call.1} parent=1 // pred_region
      _
    $region21: #{tpu_custom_call.1} parent=1 // pred_fallthru
      _
    // Predicated region
    $region22: #{tpu_custom_call.1} parent=1 // pred_check
      _
    $region23: #{tpu_custom_call.1} parent=1 // pred_check_branch
      %34 = sbr.rel (0) target = $region25
    $region24: #{tpu_custom_call.1} parent=1 // pred_region
      %35 = dma.done [#allocation4], 4096
    $region25: #{tpu_custom_call.1} parent=1 // pred_fallthru
      _
    %v36 = vld [vmem:[%s0] sm:$0xff]
    %v37 = vld [vmem:[%s0 + $0x8] sm:$0xff]
    %v38 = vld [vmem:[#allocation3] sm:$0xff]
    %v39 = vld [vmem:[#allocation3 + $0x8] sm:$0xff]
    %v40 = vld [vmem:[#allocation3 + $0x10] sm:$0xff]
    %v41 = vld [vmem:[#allocation3 + $0x18] sm:$0xff]
    %v42 = vld [vmem:[#allocation3 + $0x20] sm:$0xff]
    %v43 = vld [vmem:[#allocation3 + $0x28] sm:$0xff]
    %v44 = vld [vmem:[#allocation3 + $0x30] sm:$0xff]
    %v45 = vld [vmem:[#allocation3 + $0x38] sm:$0xff]
    %v46 = vld [vmem:[#allocation3 + $0x40] sm:$0xff]
    %v47 = vld [vmem:[#allocation3 + $0x48] sm:$0xff]
    %v48 = vld [vmem:[#allocation3 + $0x50] sm:$0xff]
    %v49 = vld [vmem:[#allocation3 + $0x58] sm:$0xff]
    %v50 = vld [vmem:[#allocation3 + $0x60] sm:$0xff]
    %v51 = vld [vmem:[#allocation3 + $0x68] sm:$0xff]
    %v52 = vld [vmem:[#allocation3 + $0x70] sm:$0xff]
    %v53 = vld [vmem:[#allocation3 + $0x78] sm:$0xff]
    %v54 = vld [vmem:[#allocation3 + $0x80] sm:$0xff]
    %v55 = vld [vmem:[#allocation3 + $0x88] sm:$0xff]
    %v56 = vld [vmem:[#allocation3 + $0x90] sm:$0xff]
    %v57 = vld [vmem:[#allocation3 + $0x98] sm:$0xff]
    %v58 = vld [vmem:[#allocation3 + $0xa0] sm:$0xff]
    %v59 = vld [vmem:[#allocation3 + $0xa8] sm:$0xff]
    %v60 = vld [vmem:[#allocation3 + $0xb0] sm:$0xff]
    %v61 = vld [vmem:[#allocation3 + $0xb8] sm:$0xff]
    %v62 = vld [vmem:[#allocation3 + $0xc0] sm:$0xff]
    %v63 = vld [vmem:[#allocation3 + $0xc8] sm:$0xff]
    %v64 = vld [vmem:[#allocation3 + $0xd0] sm:$0xff]
    %v65 = vld [vmem:[#allocation3 + $0xd8] sm:$0xff]
    %v66 = vld [vmem:[#allocation3 + $0xe0] sm:$0xff]
    %v67 = vld [vmem:[#allocation3 + $0xe8] sm:$0xff]
    %v68 = vld [vmem:[#allocation3 + $0xf0] sm:$0xff]
    %v69 = vld [vmem:[#allocation3 + $0xf8] sm:$0xff]
    %v70 = vld [vmem:[%s3] sm:$0xff]
    %v71 = vld [vmem:[%s3 + $0x8] sm:$0xff]
    %v72 = vld [vmem:[%s2] sm:$0x3]
    %73 = vmatprep.subr.mxu0 0.0
    %74 = vmatpush1.xpose.msra.mxu0 %v38
    %75 = vmatprep.subr.mxu0 0.0
    %76 = vmatpush1.xpose.msra.mxu0 %v39
    %77 = vmatprep.subr.mxu0 0.0
    %78 = vmatpush1.xpose.msra.mxu0 %v40
    %79 = vmatprep.subr.mxu0 0.0
    %80 = vmatpush1.xpose.msra.mxu0 %v41
    %81 = vmatprep.subr.mxu0 0.0
    %82 = vmatpush1.xpose.msra.mxu0 %v42
    %83 = vmatprep.subr.mxu0 0.0
    %84 = vmatpush1.xpose.msra.mxu0 %v43
    %85 = vmatprep.subr.mxu0 0.0
    %86 = vmatpush1.xpose.msra.mxu0 %v44
    %87 = vmatprep.subr.mxu0 0.0
    %88 = vmatpush1.xpose.msra.mxu0 %v45
    %89 = vmatprep.subr.mxu0 0.0
    %90 = vmatpush1.xpose.msra.mxu0 %v46
    %91 = vmatprep.subr.mxu0 0.0
    %92 = vmatpush1.xpose.msra.mxu0 %v47
    %93 = vmatprep.subr.mxu0 0.0
    %94 = vmatpush1.xpose.msra.mxu0 %v48
    %95 = vmatprep.subr.mxu0 0.0
    %96 = vmatpush1.xpose.msra.mxu0 %v49
    %97 = vmatprep.subr.mxu0 0.0
    %98 = vmatpush1.xpose.msra.mxu0 %v50
    %99 = vmatprep.subr.mxu0 0.0
    %100 = vmatpush1.xpose.msra.mxu0 %v51
    %101 = vmatprep.subr.mxu0 0.0
    %102 = vmatpush1.xpose.msra.mxu0 %v52
    %103 = vmatprep.subr.mxu0 0.0
    %104 = vmatpush1.xpose.msra.mxu0 %v53
    %105 = vmatprep.subr.mxu0 0.0
    %106 = vmatpush1.xpose.msra.mxu0 %v54
    %107 = vmatprep.subr.mxu0 0.0
    %108 = vmatpush1.xpose.msra.mxu0 %v55
    %109 = vmatprep.subr.mxu0 0.0
    %110 = vmatpush1.xpose.msra.mxu0 %v56
    %111 = vmatprep.subr.mxu0 0.0
    %112 = vmatpush1.xpose.msra.mxu0 %v57
    %113 = vmatprep.subr.mxu0 0.0
    %114 = vmatpush1.xpose.msra.mxu0 %v58
    %115 = vmatprep.subr.mxu0 0.0
    %116 = vmatpush1.xpose.msra.mxu0 %v59
    %117 = vmatprep.subr.mxu0 0.0
    %118 = vmatpush1.xpose.msra.mxu0 %v60
    %119 = vmatprep.subr.mxu0 0.0
    %120 = vmatpush1.xpose.msra.mxu0 %v61
    %121 = vmatprep.subr.mxu0 0.0
    %122 = vmatpush1.xpose.msra.mxu0 %v62
    %123 = vmatprep.subr.mxu0 0.0
    %124 = vmatpush1.xpose.msra.mxu0 %v63
    %125 = vmatprep.subr.mxu0 0.0
    %126 = vmatpush1.xpose.msra.mxu0 %v64
    %127 = vmatprep.subr.mxu0 0.0
    %128 = vmatpush1.xpose.msra.mxu0 %v65
    %129 = vmatprep.subr.mxu0 0.0
    %130 = vmatpush1.xpose.msra.mxu0 %v66
    %131 = vmatprep.subr.mxu0 0.0
    %132 = vmatpush1.xpose.msra.mxu0 %v67
    %133 = vmatprep.subr.mxu0 0.0
    %134 = vmatpush1.xpose.msra.mxu0 %v68
    %135 = vmatprep.subr.mxu0 0.0
    %136 = vmatpush1.xpose.msra.mxu0 %v69
    %137 = vmatprep.mubr.f32.mxu0 0.0
    %138 = vmatmul.mubr.f32.gmra.mrb[0].mxu0 %v36
    %v139 = vpop.f32.mrb[0].mxu0
    %v140 = vadd.f32 0.0, %v139
    %v141 = vpop.f32.mrb[0].mxu0
    %v142 = vadd.f32 0.0, %v141
    %143 = vmatprep.mubr.f32.mxu0 0.0
    %144 = vmatmul.mubr.f32.gmra.mrb[0].mxu0 %v37
    %v145 = vpop.f32.mrb[0].mxu0
    %v146 = vadd.f32 0.0, %v145
    %v147 = vpop.f32.mrb[0].mxu0
    %v148 = vadd.f32 0.0, %v147
    %149 = vdwg.mxu0
    %151 = vset.pattern.permute.xlu0 0
    %152 = vperm.xlu0 %151, %v70
    %v153 = vpop.permute.xlu0 %152
    %156 = vset.pattern.permute.xlu0 0
    %157 = vperm.xlu0 %156, %v71
    %v158 = vpop.permute.xlu0 %157
    %v160 = vmul.f32 %v140, %v153
    %v161 = vmul.f32 %v142, %v153
    %v162 = vmul.f32 %v146, %v158
    %v163 = vmul.f32 %v148, %v158
    %s164 = sld [smem:[#allocation2]]
    %v165 = vlaneseq
    %v166 = vshrl.u32 %v165, 7
    %v167 = vsub.s32 0, %v166
    %v168 = vrot.slane %v72, %v167
    %v169 = vmul.f32 %v160, %v168
    %v170 = vmul.f32 %v162, %v168
    %v171 = vlaneseq
    %v172 = vshrl.u32 %v171, 7
    %v173 = vsub.s32 1, %v172
    %v174 = vrot.slane %v72, %v173
    %v175 = vmul.f32 %v161, %v174
    %v176 = vmul.f32 %v163, %v174
    %v177 = vmax.f32 %v169, %v175
    %v178 = vmax.f32 %v170, %v176
    %v179 = vsub.f32 %v169, %v177
    %v180 = vsub.f32 %v170, %v178
    %v181 = vmul.f32 %v179, 1.442695
    %v182 = vpow.pop %v181
    %v183 = vmul.f32 %v180, 1.442695
    %v184 = vpow.pop %v183
    %v185 = vadd.f32 %v182, 0.0
    %v186 = vadd.f32 %v184, 0.0
    %v187 = vmul.f32 %v182, %v169
    %v188 = vmul.f32 %v184, %v170
    %v189 = vadd.f32 %v187, 0.0
    %v190 = vadd.f32 %v188, 0.0
    %v191 = vsub.f32 %v175, %v177
    %v192 = vsub.f32 %v176, %v178
    %v193 = vmul.f32 %v191, 1.442695
    %v194 = vpow.pop %v193
    %v195 = vmul.f32 %v192, 1.442695
    %v196 = vpow.pop %v195
    %v197 = vadd.f32 %v185, %v194
    %v198 = vadd.f32 %v186, %v196
    %v199 = vmul.f32 %v194, %v175
    %v200 = vmul.f32 %v196, %v176
    %v201 = vadd.f32 %v189, %v199
    %v202 = vadd.f32 %v190, %v200
    %v203 = vstv %s164
    %v204 = vmul.f32 %v203, %v201
    %v205 = vmul.f32 %v203, %v202
    %v206 = vrcp.pop %v197
    %v207 = vrcp.pop %v198
    %v208 = vmul.f32 %v204, %v206
    %v209 = vmul.f32 %v205, %v207
    %210 = vst [vmem:[#allocation6] sm:$0xff] %v208
    %211 = vst [vmem:[#allocation6 + $0x8] sm:$0xff] %v209
    // Predicated region
    $region26: #{tpu_custom_call.1} parent=1 // pred_check
      _
    $region27: #{tpu_custom_call.1} parent=1 // pred_check_branch
      %213 = sbr.rel (0) target = $region29
    $region28: #{tpu_custom_call.1} parent=1 // pred_region
      %s215 = ssub.s32 256, 256
      %216 = vsyncadd [#allocation5], %s215
      %s217 = sshll.u32 [#allocation6], 4
      %s218 = int_to_ptr.vmem [resolvable:$true] %s217
      %223 = dma.vmem_to_hbm [thread:$0]  %s218, 256, %s5, [#allocation5], 128, 128, 8
    $region29: #{tpu_custom_call.1} parent=1 // pred_fallthru
      _
    // Predicated region
    $region30: #{tpu_custom_call.1} parent=1 // pred_check
      _
    $region31: #{tpu_custom_call.1} parent=1 // pred_check_branch
      %225 = sbr.rel (0) target = $region33
    $region32: #{tpu_custom_call.1} parent=1 // pred_region
      %226 = dma.done [#allocation5], 256
    $region33: #{tpu_custom_call.1} parent=1 // pred_fallthru
      _
    %227 = vsyncpa [#allocation4], 1
    %228 = vsyncpa [#allocation5], 1

</llo_original>
